<compile_context>
chip_gen: v6e
topology: v6e:2x2x1
jax: 0.10.0
libtpu: 0.0.40
codegen_flags: <defaults>
</compile_context>

<pallas_src>
import functools

import jax
import jax.numpy as jnp
from jax.experimental import pallas as pl
from jax.experimental.pallas import tpu as pltpu


def _ups_loss_kernel(preds_ref, lts_ref, tgt_ref, out_ref, *,
                     threshold, ignore_label, hw, tile_n):
    """Blocks (batch squeezed): preds/lts (C, TN), tgt (1, TN), out (2, TN)."""
    j = pl.program_id(1)

    @pl.when(j == 0)
    def _init():
        out_ref[...] = jnp.zeros_like(out_ref)

    logits = preds_ref[...].astype(jnp.float32)   # (C, TN) classes in sublanes
    lts = lts_ref[...].astype(jnp.float32)        # (C, TN) softmax-ed probs
    lbl = tgt_ref[...]                            # (1, TN) int32

    c, tn = logits.shape

    # --- cross entropy (reduction='none'); class axis = sublanes (axis 0) ---
    m = jnp.max(logits, axis=0, keepdims=True)                     # (1, TN)
    lse = m + jnp.log(jnp.sum(jnp.exp(logits - m), axis=0, keepdims=True))
    class_ids = jax.lax.broadcasted_iota(jnp.int32, (c, tn), 0)
    onehot = class_ids == lbl                                      # (C, TN)
    picked = jnp.sum(jnp.where(onehot, logits, 0.0), axis=0, keepdims=True)
    ce = lse - picked                                              # (1, TN)

    # --- uncertainty = sum(-p * log p); clamp avoids NaN/-inf at p == 0 ---
    lts_safe = jnp.maximum(lts, 1e-30)
    unc = jnp.sum(-lts_safe * jnp.log(lts_safe), axis=0, keepdims=True)

    # --- in-bounds mask for the (possibly partial) last pixel tile ---
    pix = j * tile_n + jax.lax.broadcasted_iota(jnp.int32, (1, tn), 1)
    in_bounds = pix < hw

    valid = in_bounds & (lbl != ignore_label) & (unc <= threshold)  # (1, TN)
    masked_loss = jnp.where(valid, ce, 0.0)                         # (1, TN)
    valid_f = valid.astype(jnp.float32)                             # (1, TN)

    # Lane-wide partial accumulators: row 0 = loss sum, row 1 = valid count.
    out_ref[...] += jnp.concatenate([masked_loss, valid_f], axis=0)  # (2, TN)


def ups_loss(preds, targets, label_t_soft, *, threshold=0.7,
             class_num=7, ignore_label=-1, tile_n=8192):
    """preds: (b,c,h,w) logits; targets: (b,h,w) int; label_t_soft: (b,c,h,w)."""
    b, c, h, w = preds.shape
    assert c == class_num
    hw = h * w

    # Free reshapes only — no transpose, no pad, no extra HBM passes.
    preds_r = preds.reshape(b, c, hw)
    lts_r = label_t_soft.reshape(b, c, hw)
    tgt_r = targets.reshape(b, 1, hw).astype(jnp.int32)

    # Pixel tile: large multiple of 128 (amortizes ~0.35 us/grid-step), capped
    # at hw.  (7, 8192) f32 double-buffered x 2 inputs is < 1 MiB, safe even
    # under v5e's 16 MiB scoped-VMEM default.
    tile_req = max(128, (int(tile_n) // 128) * 128)
    if hw <= tile_req:
        tile = hw               # one full block (block == full array dim)
        n_steps = 1
    else:
        tile = tile_req
        n_steps = pl.cdiv(hw, tile)

    kernel = functools.partial(_ups_loss_kernel, threshold=float(threshold),
                               ignore_label=int(ignore_label),
                               hw=hw, tile_n=tile)

    partials = pl.pallas_call(
        kernel,
        out_shape=jax.ShapeDtypeStruct((b, 2, tile), jnp.float32),
        grid_spec=pltpu.PrefetchScalarGridSpec(
            num_scalar_prefetch=0,
            grid=(b, n_steps),
            in_specs=[
                pl.BlockSpec((None, c, tile), lambda bi, j: (bi, 0, j)),  # preds
                pl.BlockSpec((None, c, tile), lambda bi, j: (bi, 0, j)),  # lts
                pl.BlockSpec((None, 1, tile), lambda bi, j: (bi, 0, j)),  # tgt
            ],
            out_specs=pl.BlockSpec((None, 2, tile), lambda bi, j: (bi, 0, 0)),
        ),
        compiler_params=pltpu.CompilerParams(
            dimension_semantics=("parallel", "arbitrary")),
    )(preds_r, lts_r, tgt_r)

    loss_sum = jnp.sum(partials[:, 0, :])
    valid_cnt = jnp.sum(partials[:, 1, :])
    return loss_sum / (valid_cnt + 1e-7)


def _ups_loss_reference(preds, targets, label_t_soft, *, threshold=0.7,
                        class_num=7, ignore_label=-1):
    """Pure-JAX reference mirroring the PyTorch forward."""
    b, c, h, w = preds.shape
    preds_ = jnp.transpose(preds, (0, 2, 3, 1)).reshape(-1, c)
    lts_ = jnp.transpose(label_t_soft, (0, 2, 3, 1)).reshape(-1, c)
    tgt_ = targets.reshape(-1).astype(jnp.int32)

    logp = jax.nn.log_softmax(preds_, axis=-1)
    safe_tgt = jnp.where(tgt_ == ignore_label, 0, tgt_)
    ce = -jnp.take_along_axis(logp, safe_tgt[:, None], axis=1)[:, 0]
    ce = jnp.where(tgt_ == ignore_label, 0.0, ce)            # ignore_index
    lts_safe = jnp.maximum(lts_, 1e-30)                      # same clamp as kernel
    unc = jnp.sum(-lts_safe * jnp.log(lts_safe), axis=1)
    ce = jnp.where(unc > threshold, 0.0, ce)
    valid_cnt = jnp.sum((unc <= threshold) & (tgt_ != ignore_label))
    return jnp.sum(ce) / (valid_cnt.astype(jnp.float32) + 1e-7)


if __name__ == "__main__":
    B, C, H, W = 2, 7, 16, 16
    key = jax.random.PRNGKey(0)
    k1, k2, k3 = jax.random.split(key, 3)

    preds = jax.random.normal(k1, (B, C, H, W), dtype=jnp.float32)
    # targets include some ignore_label (-1) pixels
    targets = jax.random.randint(k2, (B, H, W), minval=-1, maxval=C,
                                 dtype=jnp.int32)
    label_t_soft = jax.nn.softmax(
        2.0 * jax.random.normal(k3, (B, C, H, W), dtype=jnp.float32), axis=1)

    loss = ups_loss(preds, targets, label_t_soft,
                    threshold=0.7, class_num=C, ignore_label=-1)
    loss = jax.block_until_ready(loss)

    ref = _ups_loss_reference(preds, targets, label_t_soft,
                              threshold=0.7, class_num=C, ignore_label=-1)
    assert jnp.allclose(loss, ref, rtol=1e-5, atol=1e-5), (loss, ref)

    print("KERNEL_OK")
</pallas_src>

<mosaic_0001>
module attributes {stable_mosaic.version = 11 : i64} {
  func.func @_ups_loss_kernel(%arg0: i32, %arg1: i32, %arg2: memref<1x7x256xf32, #tpu.memory_space<vmem>>, %arg3: memref<1x7x256xf32, #tpu.memory_space<vmem>>, %arg4: memref<1x1x256xi32, #tpu.memory_space<vmem>>, %arg5: memref<1x2x256xf32, #tpu.memory_space<vmem>>) attributes {dimension_semantics = [#tpu.dimension_semantics<parallel>, #tpu.dimension_semantics<arbitrary>], iteration_bounds = array<i64: 2, 1>, scalar_prefetch = 0 : i64, scratch_operands = 0 : i64, tpu.core_type = #tpu.core_type<tc>, window_params = [{transform_indices = @transform_0, window_bounds = array<i64: 1, 7, 256>}, {transform_indices = @transform_1, window_bounds = array<i64: 1, 7, 256>}, {transform_indices = @transform_2, window_bounds = array<i64: 1, 1, 256>}, {transform_indices = @transform_3, window_bounds = array<i64: 1, 2, 256>}]} {
    %c0_i32 = arith.constant 0 : i32
    %0 = arith.cmpi eq, %arg1, %c0_i32 : i32
    %1 = arith.extui %0 : i1 to i32
    %c0_i32_0 = arith.constant 0 : i32
    %2 = arith.cmpi ne, %1, %c0_i32_0 : i32
    scf.if %2 {
      %cst_24 = arith.constant 0.000000e+00 : f32
      %57 = vector.broadcast %cst_24 : f32 to vector<2x256xf32>
      %c0_25 = arith.constant 0 : index
      %c0_26 = arith.constant 0 : index
      %c0_27 = arith.constant 0 : index
      %58 = vector.load %arg5[%c0_25, %c0_26, %c0_27] : memref<1x2x256xf32, #tpu.memory_space<vmem>>, vector<1x2x256xf32>
      %59 = vector.shape_cast %58 : vector<1x2x256xf32> to vector<2x256xf32>
      %60 = vector.shape_cast %57 : vector<2x256xf32> to vector<1x2x256xf32>
      tpu.vector_store %arg5[%c0_25, %c0_26, %c0_27], %60 {strides = array<i32>} : memref<1x2x256xf32, #tpu.memory_space<vmem>>, vector<1x2x256xf32>,
    } else {
    }
    %c0 = arith.constant 0 : index
    %c0_1 = arith.constant 0 : index
    %c0_2 = arith.constant 0 : index
    %3 = vector.load %arg2[%c0, %c0_1, %c0_2] : memref<1x7x256xf32, #tpu.memory_space<vmem>>, vector<1x7x256xf32>
    %4 = vector.shape_cast %3 : vector<1x7x256xf32> to vector<7x256xf32>
    %c0_3 = arith.constant 0 : index
    %c0_4 = arith.constant 0 : index
    %c0_5 = arith.constant 0 : index
    %5 = vector.load %arg3[%c0_3, %c0_4, %c0_5] : memref<1x7x256xf32, #tpu.memory_space<vmem>>, vector<1x7x256xf32>
    %6 = vector.shape_cast %5 : vector<1x7x256xf32> to vector<7x256xf32>
    %c0_6 = arith.constant 0 : index
    %c0_7 = arith.constant 0 : index
    %c0_8 = arith.constant 0 : index
    %7 = vector.load %arg4[%c0_6, %c0_7, %c0_8] : memref<1x1x256xi32, #tpu.memory_space<vmem>>, vector<1x1x256xi32>
    %8 = vector.shape_cast %7 : vector<1x1x256xi32> to vector<1x256xi32>
    %cst = arith.constant dense<0xFF800000> : vector<256xf32>
    %9 = vector.multi_reduction <maximumf>, %4, %cst [0] : vector<7x256xf32> to vector<256xf32>
    %10 = vector.shape_cast %9 : vector<256xf32> to vector<1x256xf32>
    %11 = vector.broadcast %10 : vector<1x256xf32> to vector<7x256xf32>
    %12 = arith.subf %4, %11 : vector<7x256xf32>
    %13 = math.exp %12 : vector<7x256xf32>
    %cst_9 = arith.constant dense<0.000000e+00> : vector<256xf32>
    %14 = vector.multi_reduction <add>, %13, %cst_9 [0] : vector<7x256xf32> to vector<256xf32>
    %15 = vector.shape_cast %14 : vector<256xf32> to vector<1x256xf32>
    %16 = math.log %15 : vector<1x256xf32>
    %17 = arith.addf %10, %16 : vector<1x256xf32>
    %18 = tpu.iota {dimensions = array<i32: 0>} : vector<7x256xi32>
    %19 = vector.broadcast %8 : vector<1x256xi32> to vector<7x256xi32>
    %20 = arith.cmpi eq, %18, %19 : vector<7x256xi32>
    %cst_10 = arith.constant 0.000000e+00 : f32
    %21 = vector.broadcast %cst_10 : f32 to vector<7x256xf32>
    %22 = arith.select %20, %4, %21 : vector<7x256xi1>, vector<7x256xf32>
    %cst_11 = arith.constant dense<0.000000e+00> : vector<256xf32>
    %23 = vector.multi_reduction <add>, %22, %cst_11 [0] : vector<7x256xf32> to vector<256xf32>
    %24 = vector.shape_cast %23 : vector<256xf32> to vector<1x256xf32>
    %25 = arith.subf %17, %24 : vector<1x256xf32>
    %cst_12 = arith.constant 1.000000e-30 : f32
    %26 = vector.broadcast %cst_12 : f32 to vector<7x256xf32>
    %27 = arith.maximumf %6, %26 : vector<7x256xf32>
    %cst_13 = arith.constant 0.000000e+00 : f32
    %28 = vector.broadcast %cst_13 : f32 to vector<7x256xf32>
    %29 = arith.subf %28, %27 : vector<7x256xf32>
    %30 = math.log %27 : vector<7x256xf32>
    %31 = arith.mulf %29, %30 : vector<7x256xf32>
    %cst_14 = arith.constant dense<0.000000e+00> : vector<256xf32>
    %32 = vector.multi_reduction <add>, %31, %cst_14 [0] : vector<7x256xf32> to vector<256xf32>
    %33 = vector.shape_cast %32 : vector<256xf32> to vector<1x256xf32>
    %c256_i32 = arith.constant 256 : i32
    %34 = arith.muli %arg1, %c256_i32 : i32
    %35 = tpu.iota {dimensions = array<i32: 1>} : vector<1x256xi32>
    %36 = vector.broadcast %34 : i32 to vector<1x256xi32>
    %37 = arith.addi %36, %35 : vector<1x256xi32>
    %c256_i32_15 = arith.constant 256 : i32
    %38 = vector.broadcast %c256_i32_15 : i32 to vector<1x256xi32>
    %39 = arith.cmpi slt, %37, %38 : vector<1x256xi32>
    %c-1_i32 = arith.constant -1 : i32
    %40 = vector.broadcast %c-1_i32 : i32 to vector<1x256xi32>
    %41 = arith.cmpi ne, %8, %40 : vector<1x256xi32>
    %42 = arith.andi %39, %41 : vector<1x256xi1>
    %cst_16 = arith.constant 0.699999988 : f32
    %43 = vector.broadcast %cst_16 : f32 to vector<1x256xf32>
    %44 = arith.cmpf ole, %33, %43 : vector<1x256xf32>
    %45 = arith.andi %42, %44 : vector<1x256xi1>
    %cst_17 = arith.constant 0.000000e+00 : f32
    %46 = vector.broadcast %cst_17 : f32 to vector<1x256xf32>
    %47 = arith.select %45, %25, %46 : vector<1x256xi1>, vector<1x256xf32>
    %48 = arith.extui %45 : vector<1x256xi1> to vector<1x256xi32>
    %49 = arith.sitofp %48 : vector<1x256xi32> to vector<1x256xf32>
    %c0_18 = arith.constant 0 : index
    %c0_19 = arith.constant 0 : index
    %c0_20 = arith.constant 0 : index
    %50 = vector.load %arg5[%c0_18, %c0_19, %c0_20] : memref<1x2x256xf32, #tpu.memory_space<vmem>>, vector<1x2x256xf32>
    %51 = vector.shape_cast %50 : vector<1x2x256xf32> to vector<2x256xf32>
    %52 = tpu.concatenate %47, %49 in 0 : vector<1x256xf32>, vector<1x256xf32> -> vector<2x256xf32>
    %53 = arith.addf %51, %52 : vector<2x256xf32>
    %c0_21 = arith.constant 0 : index
    %c0_22 = arith.constant 0 : index
    %c0_23 = arith.constant 0 : index
    %54 = vector.load %arg5[%c0_21, %c0_22, %c0_23] : memref<1x2x256xf32, #tpu.memory_space<vmem>>, vector<1x2x256xf32>
    %55 = vector.shape_cast %54 : vector<1x2x256xf32> to vector<2x256xf32>
    %56 = vector.shape_cast %53 : vector<2x256xf32> to vector<1x2x256xf32>
    tpu.vector_store %arg5[%c0_21, %c0_22, %c0_23], %56 {strides = array<i32>} : memref<1x2x256xf32, #tpu.memory_space<vmem>>, vector<1x2x256xf32>,
    return
  }
  func.func @transform_0(%arg0: i32, %arg1: i32) -> (i32, i32, i32) {
    %c0_i32 = arith.constant 0 : i32
    %c0_i32_0 = arith.constant 0 : i32
    return %arg0, %c0_i32, %arg1 : i32, i32, i32
  }
  func.func @transform_1(%arg0: i32, %arg1: i32) -> (i32, i32, i32) {
    %c0_i32 = arith.constant 0 : i32
    %c0_i32_0 = arith.constant 0 : i32
    return %arg0, %c0_i32, %arg1 : i32, i32, i32
  }
  func.func @transform_2(%arg0: i32, %arg1: i32) -> (i32, i32, i32) {
    %c0_i32 = arith.constant 0 : i32
    %c0_i32_0 = arith.constant 0 : i32
    return %arg0, %c0_i32, %arg1 : i32, i32, i32
  }
  func.func @transform_3(%arg0: i32, %arg1: i32) -> (i32, i32, i32) {
    %c0_i32 = arith.constant 0 : i32
    %c0_i32_0 = arith.constant 0 : i32
    %c0_i32_1 = arith.constant 0 : i32
    return %arg0, %c0_i32, %c0_i32_0 : i32, i32, i32
  }
}

</mosaic_0001>

<llo_original>
// kernel: tpu_custom_call.1
$region0: #{tpu_custom_call.1}
  #allocation0 [shape = 'u32[]', space=smem, size = 0x4, offset = 0x4, fixed_abs, tag = 'smem constant byte address 0x4 - core index']
  #allocation1 [shape = 'u32[144,128]{1,0:T(1,128)}', space=vmem, size = 0x12000, scoped, tag = 'internal scratch']
  %s0 = inlined_call_operand.vmem [shape: f32[2,7,256], index: 0, kind: input, shape index: {}]
  %s1 = inlined_call_operand.vmem [shape: f32[2,7,256], index: 1, kind: input, shape index: {}]
  %s2 = inlined_call_operand.vmem [shape: s32[2,1,256], index: 2, kind: input, shape index: {}]
  %s3 = inlined_call_operand.hbm [shape: f32[2,2,256], index: 3, kind: output, shape index: {}]
  %s4 = sld [smem:[#allocation0]]
  $region49: #{tpu_custom_call.1} parent=0
    _
  %s6 = ssub.s32 1, %s4
  %s7 = scalar_select 0, %s6, %s4
  $region1: #{tpu_custom_call.1} parent=0
    #allocation2 [shape = 'u8[4096]{0}', space=vmem, size = 0x1000, scoped, tag = 'output window, operand 0']
    #allocation3 [shape = 's32[2]{0}', space=sflag, size = 0x8, scoped, tag = 'scoped memory for tpu_custom_call.1']
    %8 = vsyncpa [#allocation3], 0
    %s9 = scalar_lea.sflag [#allocation3], 1
    %10 = vsyncpa %s9, 0
    loop: start=0, step=1, limit=4
    $region2: #{tpu_custom_call.1} parent=1 // loop_pre_header
      _
    $region3: #{tpu_custom_call.1} parent=1 // loop_header
      %s12 = sphi 0, %s16
      %p13 = scmp.ge.s32.totalorder %s12, 4
      %s19 = sphi 0, %s31
      %s20 = sphi 0, %s27
      %s21 = sphi 0, %s19
      %s22 = sphi 0, %s20
      %s23 = sphi 0, %s21
      %s24 = sphi 0, %s22
      %s36 = sphi 0, %s38
      %s39 = sphi 0, %s36
      %s40 = sphi 0, %s39
      %s56 = sphi 0, %s40
      %s64 = sphi 0, %s66
      %s67 = sphi 0, %s64
      %s68 = sphi 0, %s67
      %s84 = sphi 0, %s68
      %s92 = sphi 0, %s94
      %s95 = sphi 0, %s92
      %s96 = sphi 0, %s95
      %s112 = sphi 0, %s96
      %s118 = sphi 0, %s120
      %s121 = sphi 0, %s118
      %s122 = sphi 0, %s121
      %s138 = sphi 0, %s122
    $region4: #{tpu_custom_call.1} parent=1 // loop_header_branch
      %15 = sbr.rel (%p13) target = $region8
    $region5: #{tpu_custom_call.1} parent=1 // loop_body
      %s17 = ssub.s32 %s12, 1
      %s18 = ssub.s32 %s12, 2
      %s25 = sadd.s32 1, %s20
      %p26 = scmp.ge.s32.totalorder %s25, 1
      %s27 = scalar_select %p26, 0, %s25
      %s28 = sadd.s32 1, %s19
      %s29 = scalar_select %p26, %s28, %s19
      %p30 = scmp.ge.s32.totalorder %s29, 2
      %s31 = scalar_select %p30, 0, %s29
      %s32 = ssub.s32 %s19, %s31
      %s33 = ssub.s32 %s20, %s27
      %s34 = sor.u32 %s32, %s33
      %p35 = scmp.eq.s32.totalorder %s34, 0
      %s37 = sadd.s32 %s36, 1
      %s38 = scalar_select %p35, %s36, %s37
      %p41 = pneg %p35
      %p42 = scmp.eq.s32.totalorder %s12, 1
      %p43 = por %p41, %p42
      %p44 = scmp.ne.s32.totalorder %s36, %s39
      %p45 = scmp.eq.s32.totalorder %s12, 0
      %p46 = por %p44, %p45
      %p47 = scmp.ne.s32.totalorder %s36, %s39
      %p48 = scmp.eq.s32.totalorder %s17, 1
      %p49 = por %p47, %p48
      %p50 = scmp.ne.s32.totalorder %s39, %s40
      %p51 = scmp.eq.s32.totalorder %s17, 0
      %p52 = por %p50, %p51
      %p53 = scmp.ne.s32.totalorder %s39, %s40
      %p54 = scmp.eq.s32.totalorder %s18, 1
      %p55 = por %p53, %p54
      %p57 = scmp.ne.s32.totalorder %s40, %s56
      %p58 = scmp.eq.s32.totalorder %s18, 0
      %p59 = por %p57, %p58
      %s60 = ssub.s32 %s19, %s31
      %s61 = ssub.s32 %s20, %s27
      %s62 = sor.u32 %s60, %s61
      %p63 = scmp.eq.s32.totalorder %s62, 0
      %s65 = sadd.s32 %s64, 1
      %s66 = scalar_select %p63, %s64, %s65
      %p69 = pneg %p63
      %p70 = scmp.eq.s32.totalorder %s12, 1
      %p71 = por %p69, %p70
      %p72 = scmp.ne.s32.totalorder %s64, %s67
      %p73 = scmp.eq.s32.totalorder %s12, 0
      %p74 = por %p72, %p73
      %p75 = scmp.ne.s32.totalorder %s64, %s67
      %p76 = scmp.eq.s32.totalorder %s17, 1
      %p77 = por %p75, %p76
      %p78 = scmp.ne.s32.totalorder %s67, %s68
      %p79 = scmp.eq.s32.totalorder %s17, 0
      %p80 = por %p78, %p79
      %p81 = scmp.ne.s32.totalorder %s67, %s68
      %p82 = scmp.eq.s32.totalorder %s18, 1
      %p83 = por %p81, %p82
      %p85 = scmp.ne.s32.totalorder %s68, %s84
      %p86 = scmp.eq.s32.totalorder %s18, 0
      %p87 = por %p85, %p86
      %s88 = ssub.s32 %s19, %s31
      %s89 = ssub.s32 %s20, %s27
      %s90 = sor.u32 %s88, %s89
      %p91 = scmp.eq.s32.totalorder %s90, 0
      %s93 = sadd.s32 %s92, 1
      %s94 = scalar_select %p91, %s92, %s93
      %p97 = pneg %p91
      %p98 = scmp.eq.s32.totalorder %s12, 1
      %p99 = por %p97, %p98
      %p100 = scmp.ne.s32.totalorder %s92, %s95
      %p101 = scmp.eq.s32.totalorder %s12, 0
      %p102 = por %p100, %p101
      %p103 = scmp.ne.s32.totalorder %s92, %s95
      %p104 = scmp.eq.s32.totalorder %s17, 1
      %p105 = por %p103, %p104
      %p106 = scmp.ne.s32.totalorder %s95, %s96
      %p107 = scmp.eq.s32.totalorder %s17, 0
      %p108 = por %p106, %p107
      %p109 = scmp.ne.s32.totalorder %s95, %s96
      %p110 = scmp.eq.s32.totalorder %s18, 1
      %p111 = por %p109, %p110
      %p113 = scmp.ne.s32.totalorder %s96, %s112
      %p114 = scmp.eq.s32.totalorder %s18, 0
      %p115 = por %p113, %p114
      %s116 = ssub.s32 %s19, %s31
      %p117 = scmp.eq.s32.totalorder %s116, 0
      %s119 = sadd.s32 %s118, 1
      %s120 = scalar_select %p117, %s118, %s119
      %p123 = pneg %p117
      %p124 = scmp.eq.s32.totalorder %s12, 1
      %p125 = por %p123, %p124
      %p126 = scmp.ne.s32.totalorder %s118, %s121
      %p127 = scmp.eq.s32.totalorder %s12, 0
      %p128 = por %p126, %p127
      %p129 = scmp.ne.s32.totalorder %s118, %s121
      %p130 = scmp.eq.s32.totalorder %s17, 1
      %p131 = por %p129, %p130
      %p132 = scmp.ne.s32.totalorder %s121, %s122
      %p133 = scmp.eq.s32.totalorder %s17, 0
      %p134 = por %p132, %p133
      %p135 = scmp.ne.s32.totalorder %s121, %s122
      %p136 = scmp.eq.s32.totalorder %s18, 1
      %p137 = por %p135, %p136
      %p139 = scmp.ne.s32.totalorder %s122, %s138
      %p140 = scmp.eq.s32.totalorder %s18, 0
      %p141 = por %p139, %p140
      %p142 = scmp.le.s32.totalorder 1, %s12
      %p143 = scmp.lt.s32.totalorder %s12, 3
      %p144 = pnand %p142, %p143
      %p145 = pneg %p144
      // Predicated region
      $region9: #{tpu_custom_call.1} parent=5 // pred_check
        _
      $region10: #{tpu_custom_call.1} parent=5 // pred_check_branch
        %147 = sbr.rel (%p144) target = $region12
      $region11: #{tpu_custom_call.1} parent=5 // pred_region
        %s148 = ssub.s32 %s12, 1
      $region12: #{tpu_custom_call.1} parent=5 // pred_fallthru
        _
      %p149 = scmp.lt.s32.totalorder %s12, 2
      // Predicated region
      $region13: #{tpu_custom_call.1} parent=5 // pred_check
        %p150 = pneg %p149
      $region14: #{tpu_custom_call.1} parent=5 // pred_check_branch
        %152 = sbr.rel (%p150) target = $region16
      $region15: #{tpu_custom_call.1} parent=5 // pred_region
        // Predicated region
        $region17: #{tpu_custom_call.1} parent=15 // pred_check
          %p153 = pneg %p46
        $region18: #{tpu_custom_call.1} parent=15 // pred_check_branch
          %155 = sbr.rel (%p153) target = $region20
        $region19: #{tpu_custom_call.1} parent=15 // pred_region
          %s156 = smul.u32 2, %s20
          %p157 = scmp.lt.s32.totalorder %s19, 1
          %s158 = scalar_select %p157, %s19, 1
          %p159 = scmp.lt.s32.totalorder %s156, 1
          %s160 = scalar_select %p159, %s156, 1
          %s161 = smul.addr %s158, 2
          %s162 = sadd.s32 %s160, %s161
          %s163 = smul.addr %s162, 8
          %s164 = scalar_lea.vmem %s0, %s163
          %s165 = smul.u32 2, %s20
        $region20: #{tpu_custom_call.1} parent=15 // pred_fallthru
          _
        // Predicated region
        $region21: #{tpu_custom_call.1} parent=15 // pred_check
          %p166 = pneg %p74
        $region22: #{tpu_custom_call.1} parent=15 // pred_check_branch
          %168 = sbr.rel (%p166) target = $region24
        $region23: #{tpu_custom_call.1} parent=15 // pred_region
          %s169 = smul.u32 2, %s20
          %p170 = scmp.lt.s32.totalorder %s19, 1
          %s171 = scalar_select %p170, %s19, 1
          %p172 = scmp.lt.s32.totalorder %s169, 1
          %s173 = scalar_select %p172, %s169, 1
          %s174 = smul.addr %s171, 2
          %s175 = sadd.s32 %s173, %s174
          %s176 = smul.addr %s175, 8
          %s177 = scalar_lea.vmem %s1, %s176
          %s178 = smul.u32 2, %s20
        $region24: #{tpu_custom_call.1} parent=15 // pred_fallthru
          _
        // Predicated region
        $region25: #{tpu_custom_call.1} parent=15 // pred_check
          %p179 = pneg %p102
        $region26: #{tpu_custom_call.1} parent=15 // pred_check_branch
          %181 = sbr.rel (%p179) target = $region28
        $region27: #{tpu_custom_call.1} parent=15 // pred_region
          %s182 = smul.u32 2, %s20
          %p183 = scmp.lt.s32.totalorder %s19, 1
          %s184 = scalar_select %p183, %s19, 1
          %p185 = scmp.lt.s32.totalorder %s182, 1
          %s186 = scalar_select %p185, %s182, 1
          %s187 = smul.addr %s184, 2
          %s188 = sadd.s32 %s186, %s187
          %s189 = scalar_lea.vmem %s2, %s188
          %s190 = smul.u32 2, %s20
        $region28: #{tpu_custom_call.1} parent=15 // pred_fallthru
          _
      $region16: #{tpu_custom_call.1} parent=5 // pred_fallthru
        _
      %p191 = scmp.le.s32.totalorder 1, %s12
      %p192 = scmp.lt.s32.totalorder %s12, 3
      %p193 = pnand %p191, %p192
      %p194 = pneg %p193
      // Predicated region
      $region29: #{tpu_custom_call.1} parent=5 // pred_check
        _
      $region30: #{tpu_custom_call.1} parent=5 // pred_check_branch
        %196 = sbr.rel (%p193) target = $region32
      $region31: #{tpu_custom_call.1} parent=5 // pred_region
        %s197 = ssub.s32 %s12, 1
        %s198 = smul.u32 2, %s22
        %p199 = scmp.lt.s32.totalorder %s21, 1
        %s200 = scalar_select %p199, %s21, 1
        %p201 = scmp.lt.s32.totalorder %s198, 1
        %s202 = scalar_select %p201, %s198, 1
        %s203 = smul.addr %s200, 2
        %s204 = sadd.s32 %s202, %s203
        %s205 = smul.addr %s204, 8
        %s206 = scalar_lea.vmem %s0, %s205
        %p207 = pneg %p52
        %p208 = pneg %p49
        %s209 = smul.u32 2, %s22
        %p210 = scmp.lt.s32.totalorder %s21, 1
        %s211 = scalar_select %p210, %s21, 1
        %p212 = scmp.lt.s32.totalorder %s209, 1
        %s213 = scalar_select %p212, %s209, 1
        %s214 = smul.addr %s211, 2
        %s215 = sadd.s32 %s213, %s214
        %s216 = smul.addr %s215, 8
        %s217 = scalar_lea.vmem %s1, %s216
        %p218 = pneg %p80
        %p219 = pneg %p77
        %s220 = smul.u32 2, %s22
        %p221 = scmp.lt.s32.totalorder %s21, 1
        %s222 = scalar_select %p221, %s21, 1
        %p223 = scmp.lt.s32.totalorder %s220, 1
        %s224 = scalar_select %p223, %s220, 1
        %s225 = smul.addr %s222, 2
        %s226 = sadd.s32 %s224, %s225
        %s227 = scalar_lea.vmem %s2, %s226
        %p228 = pneg %p108
        %p229 = pneg %p105
        %p230 = pneg %p134
        %p231 = pneg %p131
        %s232 = sand.u32 %s121, 1
        %s233 = scalar_lea.sflag [#allocation3], %s232
        %s234 = sand.u32 %s121, 1
        %s235 = smul.addr %s234, 4
        %s236 = scalar_lea.vmem [#allocation2], %s235
        %s237 = smul.u32 2, %s22
        %p238 = scmp.lt.s32.totalorder %s21, 1
        %s239 = scalar_select %p238, %s21, 1
        %p240 = scmp.lt.s32.totalorder %s237, 1
        %s241 = scalar_select %p240, %s237, 1
        %s242 = smul.addr %s239, 2
        %s243 = sadd.s32 %s241, %s242
        %s244 = smul.addr %s243, 8
        %s245 = scalar_lea.vmem %s0, %s244
        %s246 = smul.u32 2, %s22
        %s247 = smul.u32 2, %s22
        %p248 = scmp.lt.s32.totalorder %s21, 1
        %s249 = scalar_select %p248, %s21, 1
        %p250 = scmp.lt.s32.totalorder %s247, 1
        %s251 = scalar_select %p250, %s247, 1
        %s252 = smul.addr %s249, 2
        %s253 = sadd.s32 %s251, %s252
        %s254 = smul.addr %s253, 8
        %s255 = scalar_lea.vmem %s1, %s254
        %s256 = smul.u32 2, %s22
        %s257 = smul.u32 2, %s22
        %p258 = scmp.lt.s32.totalorder %s21, 1
        %s259 = scalar_select %p258, %s21, 1
        %p260 = scmp.lt.s32.totalorder %s257, 1
        %s261 = scalar_select %p260, %s257, 1
        %s262 = smul.addr %s259, 2
        %s263 = sadd.s32 %s261, %s262
        %s264 = scalar_lea.vmem %s2, %s263
        %s265 = smul.u32 2, %s22
        %p266 = scmp.eq.s32.totalorder %s22, 0
        // Predicated region
        $region33: #{tpu_custom_call.1} parent=31 // pred_check
          %p267 = pneg %p266
        $region34: #{tpu_custom_call.1} parent=31 // pred_check_branch
          %269 = sbr.rel (%p267) target = $region36
        $region35: #{tpu_custom_call.1} parent=31 // pred_region
          %270 = vst [vmem:[%s236] sm:$0xf] 0.0
        $region36: #{tpu_custom_call.1} parent=31 // pred_fallthru
          _
        %v271 = vld [vmem:[%s245] sm:$0x7f]
        %v272 = vld [vmem:[%s245 + $0x8] sm:$0x7f]
        %v273 = vld [vmem:[%s255] sm:$0x7f]
        %v274 = vld [vmem:[%s255 + $0x8] sm:$0x7f]
        %v275 = vld [vmem:[%s264] sm:$0x3]
        %vm276 = vcmask 1046528
        %v277 = vsel %vm276, %v271, -inf
        %v278 = vrot.slane %v277, 4
        %v279 = vmax.f32 %v277, %v278
        %v280 = vrot.slane %v279, 2
        %v281 = vmax.f32 %v279, %v280
        %v282 = vrot.slane %v281, 1
        %v283 = vmax.f32 %v281, %v282
        %v284 = vsel %vm276, %v272, -inf
        %v285 = vrot.slane %v284, 4
        %v286 = vmax.f32 %v284, %v285
        %v287 = vrot.slane %v286, 2
        %v288 = vmax.f32 %v286, %v287
        %v289 = vrot.slane %v288, 1
        %v290 = vmax.f32 %v288, %v289
        %v291 = vsub.f32 %v271, %v283
        %v292 = vsub.f32 %v272, %v290
        %v293 = vmul.f32 %v291, 1.442695
        %v294 = vpow.pop %v293
        %v295 = vmul.f32 %v292, 1.442695
        %v296 = vpow.pop %v295
        %v297 = vsel %vm276, %v294, 0.0
        %v298 = vrot.slane %v297, 4
        %v299 = vadd.f32 %v297, %v298
        %v300 = vrot.slane %v299, 2
        %v301 = vadd.f32 %v299, %v300
        %v302 = vrot.slane %v301, 1
        %v303 = vadd.f32 %v301, %v302
        %v304 = vsel %vm276, %v296, 0.0
        %v305 = vrot.slane %v304, 4
        %v306 = vadd.f32 %v304, %v305
        %v307 = vrot.slane %v306, 2
        %v308 = vadd.f32 %v306, %v307
        %v309 = vrot.slane %v308, 1
        %v310 = vadd.f32 %v308, %v309
        %v311 = vlog2.pop %v303
        %v312 = vmul.f32 %v311, 0.6931472
        %v313 = vlog2.pop %v310
        %v314 = vmul.f32 %v313, 0.6931472
        %v315 = vadd.f32 %v283, %v312
        %v316 = vadd.f32 %v290, %v314
        %v317 = vlaneseq
        %v318 = vshrl.u32 %v317, 7
        %v319 = vlaneseq
        %v320 = vshrl.u32 %v319, 7
        %v321 = vsub.s32 0, %v320
        %v322 = vrot.slane %v275, %v321
        %v323 = vlaneseq
        %v324 = vshrl.u32 %v323, 7
        %v325 = vsub.s32 1, %v324
        %v326 = vrot.slane %v275, %v325
        %vm327 = vcmp.eq.s32.totalorder %v318, %v322
        %vm328 = vcmp.eq.s32.totalorder %v318, %v326
        %v329 = vsel %vm327, %v271, 0.0
        %v330 = vsel %vm328, %v272, 0.0
        %v331 = vsel %vm276, %v329, 0.0
        %v332 = vrot.slane %v331, 4
        %v333 = vadd.f32 %v331, %v332
        %v334 = vrot.slane %v333, 2
        %v335 = vadd.f32 %v333, %v334
        %v336 = vrot.slane %v335, 1
        %v337 = vadd.f32 %v335, %v336
        %v338 = vsel %vm276, %v330, 0.0
        %v339 = vrot.slane %v338, 4
        %v340 = vadd.f32 %v338, %v339
        %v341 = vrot.slane %v340, 2
        %v342 = vadd.f32 %v340, %v341
        %v343 = vrot.slane %v342, 1
        %v344 = vadd.f32 %v342, %v343
        %v345 = vsub.f32 %v315, %v337
        %v346 = vsub.f32 %v316, %v344
        %v347 = vmax.f32 %v273, 1e-30
        %v348 = vmax.f32 %v274, 1e-30
        %v349 = vsub.f32 0.0, %v347
        %v350 = vsub.f32 0.0, %v348
        %v351 = vlog2.pop %v347
        %v352 = vmul.f32 %v351, 0.6931472
        %v353 = vlog2.pop %v348
        %v354 = vmul.f32 %v353, 0.6931472
        %v355 = vmul.f32 %v349, %v352
        %v356 = vmul.f32 %v350, %v354
        %v357 = vsel %vm276, %v355, 0.0
        %v358 = vrot.slane %v357, 4
        %v359 = vadd.f32 %v357, %v358
        %v360 = vrot.slane %v359, 2
        %v361 = vadd.f32 %v359, %v360
        %v362 = vrot.slane %v361, 1
        %v363 = vadd.f32 %v361, %v362
        %v364 = vsel %vm276, %v356, 0.0
        %v365 = vrot.slane %v364, 4
        %v366 = vadd.f32 %v364, %v365
        %v367 = vrot.slane %v366, 2
        %v368 = vadd.f32 %v366, %v367
        %v369 = vrot.slane %v368, 1
        %v370 = vadd.f32 %v368, %v369
        %s371 = smul.u32 %s22, 256
        %v372 = vlaneseq
        %v373 = vand.u32 %v372, 127
        %v374 = vadd.s32 %v373, 128
        %v375 = vstv %s371
        %v376 = vadd.s32 %v375, %v373
        %v377 = vadd.s32 %v375, %v374
        %vm378 = vcmp.lt.s32.totalorder %v376, 256
        %vm379 = vcmp.lt.s32.totalorder %v377, 256
        %vm380 = vcmp.ne.s32.totalorder %v275, 4294967295
        %v381 = vsel %vm380, 1, 0
        %v382 = vlaneseq
        %v383 = vshrl.u32 %v382, 7
        %v384 = vsub.s32 0, %v383
        %v385 = vrot.slane %v381, %v384
        %v386 = vlaneseq
        %v387 = vshrl.u32 %v386, 7
        %v388 = vsub.s32 1, %v387
        %v389 = vrot.slane %v381, %v388
        %vm390 = vcmp.ne.s32.totalorder %v385, 0
        %vm391 = vcmp.ne.s32.totalorder %v389, 0
        %vm392 = vmand %vm378, %vm390
        %vm393 = vmand %vm379, %vm391
        %vm394 = vcmp.le.f32.partialorder %v363, 0.7
        %vm395 = vcmp.le.f32.partialorder %v370, 0.7
        %vm396 = vmand %vm392, %vm394
        %vm397 = vmand %vm393, %vm395
        %v398 = vsel %vm396, %v345, 0.0
        %v399 = vsel %vm397, %v346, 0.0
        %v400 = vsel %vm396, 1, 0
        %v401 = vsel %vm397, 1, 0
        %v402 = vcvt.s32.f32 %v400
        %v403 = vcvt.s32.f32 %v401
        %v404 = vld [vmem:[%s236] sm:$0xf]
        %v407 = vrot.slane %v402, 7
        %v408 = vrot.slane %v403, 7
        %vm411 = vcmask 1040384
        %v412 = vsel %vm411, %v398, %v407
        %v413 = vsel %vm411, %v399, %v408
        %v416 = vcombine.low %v412, %v413
        %v418 = vunpack.c.l.s4 1983009808
        %v419 = vunpack.c.0.s8 %v418
        %v420 = vlaneseq
        %v421 = vshrl.u32 %v420, 7
        %v422 = vsub.s32 %v419, %v421
        %v423 = vrot.slane %v416, %v422
        %v425 = vadd.f32 %v404, %v423
        %426 = vst [vmem:[%s236] sm:$0xf] %v425
        %s427 = sand.u32 %s121, 1
        %s428 = scalar_lea.sflag [#allocation3], %s427
        %s429 = sand.u32 %s121, 1
        %s430 = smul.addr %s429, 4
        %s431 = scalar_lea.vmem [#allocation2], %s430
        // Predicated region
        $region37: #{tpu_custom_call.1} parent=31 // pred_check
          %p432 = pneg %p131
        $region38: #{tpu_custom_call.1} parent=31 // pred_check_branch
          %434 = sbr.rel (%p432) target = $region40
        $region39: #{tpu_custom_call.1} parent=31 // pred_region
          %s436 = ssub.s32 64, 64
          %437 = vsyncadd %s428, %s436
          %s438 = smul.addr %s21, 2
          %s439 = smul.addr %s438, 32
          %s440 = scalar_lea.hbm %s3, %s439
          %s442 = sshll.u32 %s431, 4
          %s443 = int_to_ptr.vmem [resolvable:$true] %s442
          %445 = dma.vmem_to_hbm [thread:$0]  %s443, 64, %s440, %s428
        $region40: #{tpu_custom_call.1} parent=31 // pred_fallthru
          _
      $region32: #{tpu_custom_call.1} parent=5 // pred_fallthru
        _
      %p446 = scmp.le.s32.totalorder 2, %s12
      // Predicated region
      $region41: #{tpu_custom_call.1} parent=5 // pred_check
        %p447 = pneg %p446
      $region42: #{tpu_custom_call.1} parent=5 // pred_check_branch
        %449 = sbr.rel (%p447) target = $region44
      $region43: #{tpu_custom_call.1} parent=5 // pred_region
        %s450 = ssub.s32 %s12, 2
        // Predicated region
        $region45: #{tpu_custom_call.1} parent=43 // pred_check
          %p451 = pneg %p137
        $region46: #{tpu_custom_call.1} parent=43 // pred_check_branch
          %453 = sbr.rel (%p451) target = $region48
        $region47: #{tpu_custom_call.1} parent=43 // pred_region
          %s454 = sand.u32 %s122, 1
          %s455 = scalar_lea.sflag [#allocation3], %s454
          %s456 = sand.u32 %s122, 1
          %s457 = smul.addr %s456, 4
          %s458 = scalar_lea.vmem [#allocation2], %s457
          %459 = dma.done %s455, 64
        $region48: #{tpu_custom_call.1} parent=43 // pred_fallthru
          _
      $region44: #{tpu_custom_call.1} parent=5 // pred_fallthru
        _
    $region6: #{tpu_custom_call.1} parent=1 // loop_footer
      %s16 = sadd.s32 1, %s12
    $region7: #{tpu_custom_call.1} parent=1 // loop_footer_branch
      %11 = sbr.rel target = $region3
    $region8: #{tpu_custom_call.1} parent=1 // loop_exit
      _
    %460 = vsyncpa [#allocation3], 1
    %s461 = scalar_lea.sflag [#allocation3], 1
    %462 = vsyncpa %s461, 1

</llo_original>
